<compile_context>
chip_gen: v7x
topology: tpu7x:2x2x1
jax: 0.10.0
libtpu: 0.0.40
codegen_flags: <defaults>
</compile_context>

<pallas_src>
import functools

import jax
import jax.numpy as jnp
from jax.experimental import pallas as pl
from jax.experimental.pallas import tpu as pltpu


_TARGET_OUT_BLOCK_BYTES = 4 * 1024 * 1024   # ~4 MiB of output per grid step
_MAX_IN_BLOCK_BYTES = 4 * 1024 * 1024       # cap on the resident input block
_MIN_PALLAS_OUT_BYTES = 4 * 1024 * 1024     # below this, jnp.pad is cheaper


def find_pad_size(in_shape: int) -> int:
    """Mirrors Padding.findPadSize."""
    if in_shape < 256:
        return (256 - in_shape) // 2
    return 0


def _padded_plane_bytes(h: int, w: int, dtype) -> int:
    """Layout-aware VMEM footprint of one (h, w) plane ((8,128) tiling)."""
    itemsize = jnp.dtype(dtype).itemsize
    sublane = {1: 32, 2: 16, 4: 8}.get(itemsize, 8)
    hp = -(-h // sublane) * sublane
    wp = -(-w // 128) * 128
    return hp * wp * itemsize


def _pad_slab_kernel(x_ref, o_ref, *, pad: int, H: int, W: int, Rs: int):
    """One (B, Rs, Wo) output row-slab: splat zeros; interior slabs also get
    the input columns stored at lanes [pad, pad+W) (VMEM-local masked store).
    Every HBM output byte is written exactly once."""
    r0 = pl.program_id(1) * Rs  # first output row of this slab

    # Zero the whole slab (lowers to splat stores; zero slabs stop here).
    o_ref[...] = jnp.zeros(o_ref.shape, o_ref.dtype)

    @pl.when(jnp.logical_and(r0 >= pad, r0 < pad + H))
    def _():
        # Slab boundaries are aligned to pad/H (Rs | pad and Rs | H), so an
        # interior slab maps to exactly Rs input rows starting at r0 - pad.
        row = pl.multiple_of(r0 - pad, Rs)
        o_ref[:, :, pad:pad + W] = x_ref[:, pl.ds(row, Rs), :]


def _pad_plane_kernel(x_ref, o_ref, *, pad: int, H: int, W: int):
    """Fallback (unaligned pad/H): one (B, Ho, Wo) block per step."""
    o_ref[...] = jnp.zeros(o_ref.shape, o_ref.dtype)
    o_ref[:, pad:pad + H, pad:pad + W] = x_ref[...]


def _pick_row_slab(pad: int, H: int):
    """Largest row-slab size (multiple of 8) that divides both pad and H."""
    for rs in (64, 32, 16, 8):
        if pad % rs == 0 and H % rs == 0:
            return rs
    return None


def zero_pad2d(x: jax.Array, pad: int, *, force_pallas: bool = False,
               block_planes: int | None = None) -> jax.Array:
    """ZeroPad2d(pad) on an NCHW tensor via a Pallas TPU kernel."""
    if pad == 0:
        return x  # identity fast path

    N, C, H, W = x.shape
    Ho, Wo = H + 2 * pad, W + 2 * pad
    P = N * C
    itemsize = jnp.dtype(x.dtype).itemsize
    in_bytes = P * H * W * itemsize
    out_bytes = P * Ho * Wo * itemsize

    # Small-output fallback: XLA's pad is already at roofline for tiny tensors.
    if not force_pallas and out_bytes < _MIN_PALLAS_OUT_BYTES:
        return jnp.pad(x, ((0, 0), (0, 0), (pad, pad), (pad, pad)))

    x_flat = x.reshape(P, H, W)  # collapse (N, C) into a flat plane axis
    in_plane_vmem = _padded_plane_bytes(H, W, x.dtype)

    rs = _pick_row_slab(pad, H)
    if rs is not None:
        # 2-axis grid: (plane blocks) x (output row slabs).  The input block
        # index is constant across the row-slab axis, so it stays resident in
        # VMEM for all slabs of a plane block.
        out_slab_bytes = rs * Wo * itemsize
        b = max(1, min(P,
                       _TARGET_OUT_BLOCK_BYTES // max(1, out_slab_bytes),
                       _MAX_IN_BLOCK_BYTES // max(1, in_plane_vmem)))
        if block_planes is not None:
            b = max(1, min(int(block_planes), P))
        kernel = functools.partial(_pad_slab_kernel, pad=pad, H=H, W=W, Rs=rs)
        grid = (pl.cdiv(P, b), Ho // rs)
        in_specs = [pl.BlockSpec((b, H, W), lambda i, j: (i, 0, 0))]
        out_specs = pl.BlockSpec((b, rs, Wo), lambda i, j: (i, j, 0))
        dims = ("parallel", "parallel")
    else:
        # Fallback for unaligned pad/H: one grid axis over plane blocks.
        out_plane_vmem = _padded_plane_bytes(Ho, Wo, x.dtype)
        b = max(1, min(P,
                       _TARGET_OUT_BLOCK_BYTES // max(1, out_plane_vmem),
                       _MAX_IN_BLOCK_BYTES // max(1, in_plane_vmem)))
        if P >= 8:
            b = max(1, min(b, P // 8))  # keep >= ~8 grid steps when P allows
        if block_planes is not None:
            b = max(1, min(int(block_planes), P))
        kernel = functools.partial(_pad_plane_kernel, pad=pad, H=H, W=W)
        grid = (pl.cdiv(P, b),)
        in_specs = [pl.BlockSpec((b, H, W), lambda i: (i, 0, 0))]
        out_specs = pl.BlockSpec((b, Ho, Wo), lambda i: (i, 0, 0))
        dims = ("parallel",)

    out_flat = pl.pallas_call(
        kernel,
        out_shape=jax.ShapeDtypeStruct((P, Ho, Wo), x.dtype),
        grid=grid,
        in_specs=in_specs,
        out_specs=out_specs,
        compiler_params=pltpu.CompilerParams(dimension_semantics=dims),
        cost_estimate=pl.CostEstimate(
            flops=0, transcendentals=0, bytes_accessed=in_bytes + out_bytes),
    )(x_flat)

    return out_flat.reshape(N, C, Ho, Wo)


class PaddingPallas:
    """JAX/Pallas equivalent of the PyTorch `Padding` module."""

    def __init__(self, in_shape: int, *, force_pallas: bool = False):
        self.pad = find_pad_size(in_shape)
        self.force_pallas = force_pallas

    def __call__(self, x: jax.Array) -> jax.Array:
        return zero_pad2d(x, self.pad, force_pallas=self.force_pallas)


if __name__ == "__main__":
    key = jax.random.PRNGKey(0)
    # Small NCHW input: batch=2, channels=4, spatial=16x16 -> pad = 120.
    N, C, H, W = 2, 4, 16, 16
    x = jax.random.normal(key, (N, C, H, W), dtype=jnp.float32)

    ref = None
    module = PaddingPallas(in_shape=H, force_pallas=True)
    out = jax.block_until_ready(module(x))
    p = module.pad
    ref = jnp.pad(x, ((0, 0), (0, 0), (p, p), (p, p)))
    assert out.shape == (N, C, H + 2 * p, W + 2 * p), out.shape
    assert out.dtype == x.dtype
    assert jnp.array_equal(out, ref), "mismatch vs reference zero-pad (slab path)"

    # Ragged plane-block case (P % block != 0): exercises Pallas' masked
    # writeback of the padded last grid block.
    out_ragged = jax.block_until_ready(
        zero_pad2d(x, p, force_pallas=True, block_planes=3))
    assert jnp.array_equal(out_ragged, ref), "mismatch on ragged plane blocks"

    # Unaligned pad (pad % 8 != 0) -> single-axis fallback kernel.
    H2 = 20
    p2 = find_pad_size(H2)  # 118
    x2 = jax.random.normal(jax.random.PRNGKey(1), (1, 2, H2, H2), jnp.float32)
    out2 = jax.block_until_ready(zero_pad2d(x2, p2, force_pallas=True))
    ref2 = jnp.pad(x2, ((0, 0), (0, 0), (p2, p2), (p2, p2)))
    assert jnp.array_equal(out2, ref2), "mismatch vs reference (fallback path)"

    # Auto path (tiny output -> jnp.pad) and pad == 0 identity path.
    out_auto = jax.block_until_ready(PaddingPallas(in_shape=H)(x))
    assert jnp.array_equal(out_auto, ref)
    module_id = PaddingPallas(in_shape=256)
    out_id = jax.block_until_ready(module_id(x))
    assert out_id.shape == x.shape and jnp.array_equal(out_id, x)

    print("KERNEL_OK")
</pallas_src>

<mosaic_0001>
module attributes {stable_mosaic.version = 11 : i64} {
  func.func @_pad_slab_kernel(%arg0: i32, %arg1: i32, %arg2: memref<8x16x16xf32, #tpu.memory_space<vmem>>, %arg3: memref<8x8x256xf32, #tpu.memory_space<vmem>>) attributes {dimension_semantics = [#tpu.dimension_semantics<parallel>, #tpu.dimension_semantics<parallel>], iteration_bounds = array<i64: 1, 32>, scalar_prefetch = 0 : i64, scratch_operands = 0 : i64, tpu.core_type = #tpu.core_type<tc>, window_params = [{transform_indices = @transform_0, window_bounds = array<i64: 8, 16, 16>}, {transform_indices = @transform_1, window_bounds = array<i64: 8, 8, 256>}]} {
    %c8_i32 = arith.constant 8 : i32
    %0 = arith.muli %arg1, %c8_i32 : i32
    %cst = arith.constant 0.000000e+00 : f32
    %1 = vector.broadcast %cst : f32 to vector<8x8x256xf32>
    %c0 = arith.constant 0 : index
    %c0_0 = arith.constant 0 : index
    %c0_1 = arith.constant 0 : index
    %2 = vector.load %arg3[%c0, %c0_0, %c0_1] : memref<8x8x256xf32, #tpu.memory_space<vmem>>, vector<8x8x256xf32>
    tpu.vector_store %arg3[%c0, %c0_0, %c0_1], %1 {strides = array<i32>} : memref<8x8x256xf32, #tpu.memory_space<vmem>>, vector<8x8x256xf32>,
    %c120_i32 = arith.constant 120 : i32
    %3 = arith.cmpi sge, %0, %c120_i32 : i32
    %c136_i32 = arith.constant 136 : i32
    %4 = arith.cmpi slt, %0, %c136_i32 : i32
    %5 = arith.andi %3, %4 : i1
    %6 = arith.extui %5 : i1 to i32
    %c0_i32 = arith.constant 0 : i32
    %7 = arith.cmpi ne, %6, %c0_i32 : i32
    scf.if %7 {
      %c120_i32_2 = arith.constant 120 : i32
      %8 = arith.subi %0, %c120_i32_2 : i32
      %9 = tpu.assume_multiple %8, 8 : i32
      %c0_3 = arith.constant 0 : index
      %10 = arith.index_cast %9 : i32 to index
      %c0_4 = arith.constant 0 : index
      %11 = vector.load %arg2[%c0_3, %10, %c0_4] : memref<8x16x16xf32, #tpu.memory_space<vmem>>, vector<8x8x16xf32>
      %c0_5 = arith.constant 0 : index
      %c0_6 = arith.constant 0 : index
      %c120 = arith.constant 120 : index
      %12 = vector.load %arg3[%c0_5, %c0_6, %c120] : memref<8x8x256xf32, #tpu.memory_space<vmem>>, vector<8x8x16xf32>
      tpu.vector_store %arg3[%c0_5, %c0_6, %c120], %11 {strides = array<i32>} : memref<8x8x256xf32, #tpu.memory_space<vmem>>, vector<8x8x16xf32>,
    } else {
    }
    return
  }
  func.func @transform_0(%arg0: i32, %arg1: i32) -> (i32, i32, i32) {
    %c0_i32 = arith.constant 0 : i32
    %c0_i32_0 = arith.constant 0 : i32
    %c0_i32_1 = arith.constant 0 : i32
    return %arg0, %c0_i32, %c0_i32_0 : i32, i32, i32
  }
  func.func @transform_1(%arg0: i32, %arg1: i32) -> (i32, i32, i32) {
    %c0_i32 = arith.constant 0 : i32
    %c0_i32_0 = arith.constant 0 : i32
    return %arg0, %arg1, %c0_i32 : i32, i32, i32
  }
}

</mosaic_0001>

<llo_original>
// kernel: tpu_custom_call.1
$region0: #{tpu_custom_call.1}
  #allocation0 [shape = 'u32[]', space=smem, size = 0x4, offset = 0x4, fixed_abs, tag = 'smem constant byte address 0x4 - core index']
  #allocation1 [shape = 'u32[144,128]{1,0:T(1,128)}', space=vmem, size = 0x12000, scoped, tag = 'internal scratch']
  %s0 = inlined_call_operand.hbm [shape: f32[8,16,16], index: 0, kind: input, shape index: {}]
  %s1 = inlined_call_operand.hbm [shape: f32[8,256,256], index: 1, kind: output, shape index: {}]
  %s2 = sld [smem:[#allocation0]]
  $region45: #{tpu_custom_call.1} parent=0
    _
  %s4 = ssub.s32 1, %s2
  %s5 = scalar_select 0, %s4, %s2
  $region1: #{tpu_custom_call.1} parent=0
    #allocation2 [shape = 'u8[65536]{0}', space=vmem, size = 0x10000, scoped, tag = 'input window, operand 0, single buffered']
    #allocation3 [shape = 's32[2]{0}', space=sflag, size = 0x8, scoped, tag = 'scoped memory for tpu_custom_call.1']
    #allocation4 [shape = 's32[2]{0}', space=sflag, size = 0x8, scoped, tag = 'scoped memory for tpu_custom_call.1']
    #allocation5 [shape = 'u8[131072]{0}', space=vmem, size = 0x20000, scoped, tag = 'output window, operand 0']
    %6 = vsyncpa [#allocation3], 0
    %7 = vsyncpa [#allocation4], 0
    %s8 = scalar_lea.sflag [#allocation4], 1
    %9 = vsyncpa %s8, 0
    loop: start=0, step=1, limit=34
    $region2: #{tpu_custom_call.1} parent=1 // loop_pre_header
      _
    $region3: #{tpu_custom_call.1} parent=1 // loop_header
      %s11 = sphi 0, %s15
      %p12 = scmp.ge.s32.totalorder %s11, 34
      %s18 = sphi 0, %s30
      %s19 = sphi 0, %s26
      %s20 = sphi 0, %s18
      %s21 = sphi 0, %s19
      %s22 = sphi 0, %s20
      %s23 = sphi 0, %s21
      %s33 = sphi 0, %s35
      %s36 = sphi 0, %s33
      %s37 = sphi 0, %s36
      %s53 = sphi 0, %s37
      %s61 = sphi 0, %s63
      %s64 = sphi 0, %s61
      %s65 = sphi 0, %s64
      %s81 = sphi 0, %s65
    $region4: #{tpu_custom_call.1} parent=1 // loop_header_branch
      %14 = sbr.rel (%p12) target = $region8
    $region5: #{tpu_custom_call.1} parent=1 // loop_body
      %s16 = ssub.s32 %s11, 1
      %s17 = ssub.s32 %s11, 2
      %s24 = sadd.s32 1, %s19
      %p25 = scmp.ge.s32.totalorder %s24, 32
      %s26 = scalar_select %p25, 0, %s24
      %s27 = sadd.s32 1, %s18
      %s28 = scalar_select %p25, %s27, %s18
      %p29 = scmp.ge.s32.totalorder %s28, 1
      %s30 = scalar_select %p29, 0, %s28
      %s31 = ssub.s32 %s18, %s30
      %p32 = scmp.eq.s32.totalorder %s31, 0
      %s34 = sadd.s32 %s33, 1
      %s35 = scalar_select %p32, %s33, %s34
      %p38 = pneg %p32
      %p39 = scmp.eq.s32.totalorder %s11, 31
      %p40 = por %p38, %p39
      %p41 = scmp.ne.s32.totalorder %s33, %s36
      %p42 = scmp.eq.s32.totalorder %s11, 0
      %p43 = por %p41, %p42
      %p44 = scmp.ne.s32.totalorder %s33, %s36
      %p45 = scmp.eq.s32.totalorder %s16, 31
      %p46 = por %p44, %p45
      %p47 = scmp.ne.s32.totalorder %s36, %s37
      %p48 = scmp.eq.s32.totalorder %s16, 0
      %p49 = por %p47, %p48
      %p50 = scmp.ne.s32.totalorder %s36, %s37
      %p51 = scmp.eq.s32.totalorder %s17, 31
      %p52 = por %p50, %p51
      %p54 = scmp.ne.s32.totalorder %s37, %s53
      %p55 = scmp.eq.s32.totalorder %s17, 0
      %p56 = por %p54, %p55
      %s57 = ssub.s32 %s18, %s30
      %s58 = ssub.s32 %s19, %s26
      %s59 = sor.u32 %s57, %s58
      %p60 = scmp.eq.s32.totalorder %s59, 0
      %s62 = sadd.s32 %s61, 1
      %s63 = scalar_select %p60, %s61, %s62
      %p66 = pneg %p60
      %p67 = scmp.eq.s32.totalorder %s11, 31
      %p68 = por %p66, %p67
      %p69 = scmp.ne.s32.totalorder %s61, %s64
      %p70 = scmp.eq.s32.totalorder %s11, 0
      %p71 = por %p69, %p70
      %p72 = scmp.ne.s32.totalorder %s61, %s64
      %p73 = scmp.eq.s32.totalorder %s16, 31
      %p74 = por %p72, %p73
      %p75 = scmp.ne.s32.totalorder %s64, %s65
      %p76 = scmp.eq.s32.totalorder %s16, 0
      %p77 = por %p75, %p76
      %p78 = scmp.ne.s32.totalorder %s64, %s65
      %p79 = scmp.eq.s32.totalorder %s17, 31
      %p80 = por %p78, %p79
      %p82 = scmp.ne.s32.totalorder %s65, %s81
      %p83 = scmp.eq.s32.totalorder %s17, 0
      %p84 = por %p82, %p83
      %p85 = scmp.le.s32.totalorder 1, %s11
      %p86 = scmp.lt.s32.totalorder %s11, 33
      %p87 = pnand %p85, %p86
      %p88 = pneg %p87
      // Predicated region
      $region9: #{tpu_custom_call.1} parent=5 // pred_check
        _
      $region10: #{tpu_custom_call.1} parent=5 // pred_check_branch
        %90 = sbr.rel (%p87) target = $region12
      $region11: #{tpu_custom_call.1} parent=5 // pred_region
        %s91 = ssub.s32 %s11, 1
        // Predicated region
        $region13: #{tpu_custom_call.1} parent=11 // pred_check
          %p92 = pneg %p49
        $region14: #{tpu_custom_call.1} parent=11 // pred_check_branch
          %94 = sbr.rel (%p92) target = $region16
        $region15: #{tpu_custom_call.1} parent=11 // pred_region
          %s95 = smul.u32 8, %s20
          %s97 = ssub.s32 2048, 2048
          %98 = vsyncadd [#allocation3], %s97
          %s99 = smul.addr %s95, 2
          %s100 = smul.addr %s99, 128
          %s101 = scalar_lea.hbm %s0, %s100
          %s102 = sshll.u32 [#allocation2], 4
          %s103 = int_to_ptr.vmem [resolvable:$true] %s102
          %108 = dma.hbm_to_vmem [thread:$0]  %s101, 2048, %s103, [#allocation3], 128, 128, 8
        $region16: #{tpu_custom_call.1} parent=11 // pred_fallthru
          _
      $region12: #{tpu_custom_call.1} parent=5 // pred_fallthru
        _
      %p109 = scmp.lt.s32.totalorder %s11, 32
      // Predicated region
      $region17: #{tpu_custom_call.1} parent=5 // pred_check
        %p110 = pneg %p109
      $region18: #{tpu_custom_call.1} parent=5 // pred_check_branch
        %112 = sbr.rel (%p110) target = $region20
      $region19: #{tpu_custom_call.1} parent=5 // pred_region
        _
      $region20: #{tpu_custom_call.1} parent=5 // pred_fallthru
        _
      %p113 = scmp.le.s32.totalorder 1, %s11
      %p114 = scmp.lt.s32.totalorder %s11, 33
      %p115 = pnand %p113, %p114
      %p116 = pneg %p115
      // Predicated region
      $region21: #{tpu_custom_call.1} parent=5 // pred_check
        _
      $region22: #{tpu_custom_call.1} parent=5 // pred_check_branch
        %118 = sbr.rel (%p115) target = $region24
      $region23: #{tpu_custom_call.1} parent=5 // pred_region
        %s119 = ssub.s32 %s11, 1
        // Predicated region
        $region25: #{tpu_custom_call.1} parent=23 // pred_check
          %p120 = pneg %p49
        $region26: #{tpu_custom_call.1} parent=23 // pred_check_branch
          %122 = sbr.rel (%p120) target = $region28
        $region27: #{tpu_custom_call.1} parent=23 // pred_region
          %123 = dma.done [#allocation3], 2048
        $region28: #{tpu_custom_call.1} parent=23 // pred_fallthru
          _
        %p124 = pneg %p49
        %p125 = pneg %p46
        %p126 = pneg %p77
        %p127 = pneg %p74
        %s128 = sand.u32 %s64, 1
        %s129 = scalar_lea.sflag [#allocation4], %s128
        %s130 = sand.u32 %s64, 1
        %s131 = smul.addr %s130, 128
        %s132 = scalar_lea.vmem [#allocation5], %s131
        %s133 = smul.u32 8, %s20
        %s134 = smul.u32 8, %s20
        %s135 = smul.u32 %s21, 8
        %136 = vst [vmem:[%s132] sm:$0xff] 0.0
        %137 = vst [vmem:[%s132 + $0x8] sm:$0xff] 0.0
        %138 = vst [vmem:[%s132 + $0x10] sm:$0xff] 0.0
        %139 = vst [vmem:[%s132 + $0x18] sm:$0xff] 0.0
        %140 = vst [vmem:[%s132 + $0x20] sm:$0xff] 0.0
        %141 = vst [vmem:[%s132 + $0x28] sm:$0xff] 0.0
        %142 = vst [vmem:[%s132 + $0x30] sm:$0xff] 0.0
        %143 = vst [vmem:[%s132 + $0x38] sm:$0xff] 0.0
        %144 = vst [vmem:[%s132 + $0x40] sm:$0xff] 0.0
        %145 = vst [vmem:[%s132 + $0x48] sm:$0xff] 0.0
        %146 = vst [vmem:[%s132 + $0x50] sm:$0xff] 0.0
        %147 = vst [vmem:[%s132 + $0x58] sm:$0xff] 0.0
        %148 = vst [vmem:[%s132 + $0x60] sm:$0xff] 0.0
        %149 = vst [vmem:[%s132 + $0x68] sm:$0xff] 0.0
        %150 = vst [vmem:[%s132 + $0x70] sm:$0xff] 0.0
        %151 = vst [vmem:[%s132 + $0x78] sm:$0xff] 0.0
        %p152 = scmp.ge.s32.totalorder %s135, 120
        %p153 = scmp.lt.s32.totalorder %s135, 136
        %p154 = pnand %p152, %p153
        %p155 = pneg %p154
        // Predicated region
        $region29: #{tpu_custom_call.1} parent=23 // pred_check
          _
        $region30: #{tpu_custom_call.1} parent=23 // pred_check_branch
          %157 = sbr.rel (%p154) target = $region32
        $region31: #{tpu_custom_call.1} parent=23 // pred_region
          %s158 = ssub.s32 %s135, 120
          %s159 = scalar_lea.vmem [#allocation2], %s158
          %v160 = vld [vmem:[%s159] sm:$0xff]
          %v161 = vld [vmem:[%s159 + $0x10] sm:$0xff]
          %v162 = vld [vmem:[%s159 + $0x20] sm:$0xff]
          %v163 = vld [vmem:[%s159 + $0x30] sm:$0xff]
          %v164 = vld [vmem:[%s159 + $0x40] sm:$0xff]
          %v165 = vld [vmem:[%s159 + $0x50] sm:$0xff]
          %v166 = vld [vmem:[%s159 + $0x60] sm:$0xff]
          %v167 = vld [vmem:[%s159 + $0x70] sm:$0xff]
          %176 = vrot.lane.b32.xlu0 %v160, 120
          %v177 = vpop.permute.xlu0 %176
          %178 = vrot.lane.b32.xlu0 %v161, 120
          %v179 = vpop.permute.xlu0 %178
          %180 = vrot.lane.b32.xlu0 %v162, 120
          %v181 = vpop.permute.xlu0 %180
          %182 = vrot.lane.b32.xlu0 %v163, 120
          %v183 = vpop.permute.xlu0 %182
          %184 = vrot.lane.b32.xlu0 %v164, 120
          %v185 = vpop.permute.xlu0 %184
          %186 = vrot.lane.b32.xlu0 %v165, 120
          %v187 = vpop.permute.xlu0 %186
          %188 = vrot.lane.b32.xlu0 %v166, 120
          %v189 = vpop.permute.xlu0 %188
          %190 = vrot.lane.b32.xlu0 %v167, 120
          %v191 = vpop.permute.xlu0 %190
          %vm200 = vcmask 1048512
          %201 = vst.msk [vmem:[%s132] sm:$0xff] %vm200, %v177
          %vm202 = vcmask 64512
          %203 = vst.msk [vmem:[%s132 + $0x8] sm:$0xff] %vm202, %v177
          %204 = vst.msk [vmem:[%s132 + $0x10] sm:$0xff] %vm200, %v179
          %205 = vst.msk [vmem:[%s132 + $0x18] sm:$0xff] %vm202, %v179
          %206 = vst.msk [vmem:[%s132 + $0x20] sm:$0xff] %vm200, %v181
          %207 = vst.msk [vmem:[%s132 + $0x28] sm:$0xff] %vm202, %v181
          %208 = vst.msk [vmem:[%s132 + $0x30] sm:$0xff] %vm200, %v183
          %209 = vst.msk [vmem:[%s132 + $0x38] sm:$0xff] %vm202, %v183
          %210 = vst.msk [vmem:[%s132 + $0x40] sm:$0xff] %vm200, %v185
          %211 = vst.msk [vmem:[%s132 + $0x48] sm:$0xff] %vm202, %v185
          %212 = vst.msk [vmem:[%s132 + $0x50] sm:$0xff] %vm200, %v187
          %213 = vst.msk [vmem:[%s132 + $0x58] sm:$0xff] %vm202, %v187
          %214 = vst.msk [vmem:[%s132 + $0x60] sm:$0xff] %vm200, %v189
          %215 = vst.msk [vmem:[%s132 + $0x68] sm:$0xff] %vm202, %v189
          %216 = vst.msk [vmem:[%s132 + $0x70] sm:$0xff] %vm200, %v191
          %217 = vst.msk [vmem:[%s132 + $0x78] sm:$0xff] %vm202, %v191
        $region32: #{tpu_custom_call.1} parent=23 // pred_fallthru
          _
        %s218 = sand.u32 %s64, 1
        %s219 = scalar_lea.sflag [#allocation4], %s218
        %s220 = sand.u32 %s64, 1
        %s221 = smul.addr %s220, 128
        %s222 = scalar_lea.vmem [#allocation5], %s221
        // Predicated region
        $region33: #{tpu_custom_call.1} parent=23 // pred_check
          %p223 = pneg %p74
        $region34: #{tpu_custom_call.1} parent=23 // pred_check_branch
          %225 = sbr.rel (%p223) target = $region36
        $region35: #{tpu_custom_call.1} parent=23 // pred_region
          %s226 = smul.u32 8, %s20
          %s228 = ssub.s32 2048, 2048
          %229 = vsyncadd %s219, %s228
          %s230 = smul.addr %s21, 2
          %s231 = smul.addr %s226, 64
          %s232 = sadd.s32 %s230, %s231
          %s233 = smul.addr %s232, 128
          %s234 = scalar_lea.hbm %s1, %s233
          %s235 = sshll.u32 %s222, 4
          %s236 = int_to_ptr.vmem [resolvable:$true] %s235
          %241 = dma.vmem_to_hbm [thread:$0]  %s236, 2048, %s234, %s219, 256, 8192, 16
        $region36: #{tpu_custom_call.1} parent=23 // pred_fallthru
          _
      $region24: #{tpu_custom_call.1} parent=5 // pred_fallthru
        _
      %p242 = scmp.le.s32.totalorder 2, %s11
      // Predicated region
      $region37: #{tpu_custom_call.1} parent=5 // pred_check
        %p243 = pneg %p242
      $region38: #{tpu_custom_call.1} parent=5 // pred_check_branch
        %245 = sbr.rel (%p243) target = $region40
      $region39: #{tpu_custom_call.1} parent=5 // pred_region
        %s246 = ssub.s32 %s11, 2
        // Predicated region
        $region41: #{tpu_custom_call.1} parent=39 // pred_check
          %p247 = pneg %p80
        $region42: #{tpu_custom_call.1} parent=39 // pred_check_branch
          %249 = sbr.rel (%p247) target = $region44
        $region43: #{tpu_custom_call.1} parent=39 // pred_region
          %s250 = sand.u32 %s65, 1
          %s251 = scalar_lea.sflag [#allocation4], %s250
          %s252 = sand.u32 %s65, 1
          %s253 = smul.addr %s252, 128
          %s254 = scalar_lea.vmem [#allocation5], %s253
          %255 = dma.done %s251, 2048
        $region44: #{tpu_custom_call.1} parent=39 // pred_fallthru
          _
      $region40: #{tpu_custom_call.1} parent=5 // pred_fallthru
        _
    $region6: #{tpu_custom_call.1} parent=1 // loop_footer
      %s15 = sadd.s32 1, %s11
    $region7: #{tpu_custom_call.1} parent=1 // loop_footer_branch
      %10 = sbr.rel target = $region3
    $region8: #{tpu_custom_call.1} parent=1 // loop_exit
      _
    %256 = vsyncpa [#allocation3], 1
    %s257 = scalar_lea.sflag [#allocation3], 1
    %258 = vsyncpa %s257, 1
    %259 = vsyncpa [#allocation4], 1
    %s260 = scalar_lea.sflag [#allocation4], 1
    %261 = vsyncpa %s260, 1

</llo_original>
